<compile_context>
chip_gen: v6e
topology: v6e:2x2x1
jax: 0.10.0
libtpu: 0.0.40
codegen_flags: <defaults>
</compile_context>

<pallas_src>
import jax
import jax.numpy as jnp
from jax.experimental import pallas as pl
from jax.experimental.pallas import tpu as pltpu

_LANE = 128            # TPU vreg lane width; last dim of the 2D slab.
_MAX_BLOCK_ROWS = 4096  # 4096 rows * 128 lanes * 4 B = 2 MiB f32 per block.


def _copy_kernel(x_ref, o_ref):
    # Identity: copy the current (block_rows, 128) lane-dense slab.
    o_ref[...] = x_ref[...]


def image_cube_identity(cube: jax.Array, *, use_pallas: bool = True) -> jax.Array:
    """Identity pass over a (nchan, npix, npix) cube via a tiled Pallas copy.

    The fastest identity is no kernel at all (`use_pallas=False` just returns
    the cube).  When the kernel path is used, the cube is presented to the TPU
    as a lane-dense 2D (rows, 128) slab and copied in ~2 MiB blocks.
    """
    if not use_pallas:
        return cube

    orig_shape = cube.shape
    total = cube.size
    if total == 0 or total % _LANE != 0:
        # Cannot form a lane-dense slab; the optimal identity is zero traffic.
        return cube

    rows = total // _LANE
    flat = cube.reshape(rows, _LANE)  # free layout plumbing (row-major bitcast)

    # Block rows: full extent if small, else a 2 MiB (f32) block; 4096 is a
    # multiple of 8 so the (8, 128) tiling rule holds, and a partial final
    # block is handled by Pallas edge masking.
    block_rows = rows if rows <= _MAX_BLOCK_ROWS else _MAX_BLOCK_ROWS
    grid = (pl.cdiv(rows, block_rows),)

    itemsize = jnp.dtype(flat.dtype).itemsize
    bytes_accessed = 2 * total * itemsize  # read + write

    out = pl.pallas_call(
        _copy_kernel,
        out_shape=jax.ShapeDtypeStruct((rows, _LANE), flat.dtype),
        grid_spec=pltpu.PrefetchScalarGridSpec(
            num_scalar_prefetch=0,
            grid=grid,
            in_specs=[pl.BlockSpec((block_rows, _LANE), lambda i: (i, 0))],
            out_specs=pl.BlockSpec((block_rows, _LANE), lambda i: (i, 0)),
        ),
        compiler_params=pltpu.CompilerParams(
            # "parallel" lets v7x shard blocks across its 2 TensorCores;
            # harmless on single-TC v5e/v6e.
            dimension_semantics=("parallel",),
        ),
        # Under a donating jit, the output aliases the input HBM buffer.
        input_output_aliases={0: 0},
        # Advisory: lets XLA overlap this pure-DMA copy with neighbors.
        cost_estimate=pl.CostEstimate(
            flops=0, transcendentals=0, bytes_accessed=bytes_accessed
        ),
    )(flat)

    return out.reshape(orig_shape)


class ImageCube:
    """JAX/Pallas port of mpol.images.ImageCube (forward semantics only)."""

    def __init__(self, cell_size=None, npix=None, nchan=None,
                 passthrough=False, cube=None):
        assert npix is not None and nchan is not None
        self.cell_size = cell_size
        self.npix = npix
        self.nchan = nchan
        self.passthrough = passthrough
        if not self.passthrough:
            if cube is None:
                # nn.Parameter(torch.full((nchan, npix, npix), 0.0, dtype=double))
                self.cube = jnp.zeros((nchan, npix, npix), dtype=jnp.float32)
            else:
                self.cube = cube
        else:
            self.cube = None

    def forward(self, cube=None):
        if cube is not None:
            assert self.passthrough, \
                "ImageCube.passthrough must be True if supplying cube."
        if not self.passthrough:
            assert cube is None, \
                "Do not supply cube if ImageCube.passthrough == False."
            cube = self.cube
        else:
            # Mirror mpol: keep a handle for sky_cube / to_FITS-style accessors.
            self.cube = cube
        # Identity op, executed through the Pallas copy kernel.
        return image_cube_identity(cube)

    def __call__(self, cube=None):
        return self.forward(cube)


if __name__ == "__main__":
    key = jax.random.PRNGKey(0)
    nchan, npix = 4, 16

    # --- passthrough=True: cube supplied at call time -----------------------
    cube_in = jax.random.normal(key, (nchan, npix, npix), dtype=jnp.float32)
    cube_in_host = jax.device_get(cube_in)  # host reference (robust to donation)
    model_pt = ImageCube(cell_size=0.005, npix=npix, nchan=nchan,
                         passthrough=True)
    out_pt = model_pt(cube_in)
    out_pt = jax.block_until_ready(out_pt)
    assert out_pt.shape == (nchan, npix, npix)
    assert out_pt.dtype == jnp.float32
    assert jnp.allclose(out_pt, jnp.asarray(cube_in_host)), \
        "passthrough identity mismatch"

    # --- passthrough=False: stored parameter cube (deterministic init) ------
    key2 = jax.random.fold_in(key, 1)
    param_cube = jax.random.normal(key2, (nchan, npix, npix), dtype=jnp.float32)
    param_cube_host = jax.device_get(param_cube)
    model_param = ImageCube(cell_size=0.005, npix=npix, nchan=nchan,
                            passthrough=False, cube=param_cube)
    out_param = model_param()
    out_param = jax.block_until_ready(out_param)
    assert out_param.shape == (nchan, npix, npix)
    assert jnp.allclose(out_param, jnp.asarray(param_cube_host)), \
        "parameter identity mismatch"

    # --- multi-block path: exercises row tiling + partial final block -------
    key3 = jax.random.fold_in(key, 2)
    big = jax.random.normal(key3, (3, 512, 512), dtype=jnp.float32)  # 6144 rows -> 2 blocks
    big_host = jax.device_get(big)
    out_big = jax.block_until_ready(image_cube_identity(big))
    assert out_big.shape == big_host.shape
    assert jnp.allclose(out_big, jnp.asarray(big_host)), "multi-block identity mismatch"

    print("KERNEL_OK")
</pallas_src>

<mosaic_0001>
module attributes {stable_mosaic.version = 11 : i64} {
  func.func @_copy_kernel(%arg0: i32, %arg1: memref<8x128xf32, #tpu.memory_space<vmem>>, %arg2: memref<8x128xf32, #tpu.memory_space<vmem>>) attributes {dimension_semantics = [#tpu.dimension_semantics<parallel>], iteration_bounds = array<i64: 1>, scalar_prefetch = 0 : i64, scratch_operands = 0 : i64, tpu.core_type = #tpu.core_type<tc>, window_params = [{transform_indices = @transform_0, window_bounds = array<i64: 8, 128>}, {transform_indices = @transform_1, window_bounds = array<i64: 8, 128>}]} {
    %c0 = arith.constant 0 : index
    %c0_0 = arith.constant 0 : index
    %0 = vector.load %arg1[%c0, %c0_0] : memref<8x128xf32, #tpu.memory_space<vmem>>, vector<8x128xf32>
    %c0_1 = arith.constant 0 : index
    %c0_2 = arith.constant 0 : index
    %1 = vector.load %arg2[%c0_1, %c0_2] : memref<8x128xf32, #tpu.memory_space<vmem>>, vector<8x128xf32>
    tpu.vector_store %arg2[%c0_1, %c0_2], %0 {strides = array<i32>} : memref<8x128xf32, #tpu.memory_space<vmem>>, vector<8x128xf32>,
    return
  }
  func.func @transform_0(%arg0: i32) -> (i32, i32) {
    %c0_i32 = arith.constant 0 : i32
    %c0_i32_0 = arith.constant 0 : i32
    return %arg0, %c0_i32 : i32, i32
  }
  func.func @transform_1(%arg0: i32) -> (i32, i32) {
    %c0_i32 = arith.constant 0 : i32
    %c0_i32_0 = arith.constant 0 : i32
    return %arg0, %c0_i32 : i32, i32
  }
}

</mosaic_0001>

<llo_original>
// kernel: tpu_custom_call.1
$region0: #{tpu_custom_call.1}
  #allocation0 [shape = 'u32[]', space=smem, size = 0x4, offset = 0x4, fixed_abs, tag = 'smem constant byte address 0x4 - core index']
  #allocation1 [shape = 'u32[144,128]{1,0:T(1,128)}', space=vmem, size = 0x12000, scoped, tag = 'internal scratch']
  %s0 = inlined_call_operand.hbm [shape: f32[8,128], index: 0, kind: input, shape index: {}, may-alias: {0,1}]
  %s1 = inlined_call_operand.hbm [shape: f32[8,128], index: 1, kind: output, shape index: {}, may-alias: {0,1}]
  %s2 = sld [smem:[#allocation0]]
  $region18: #{tpu_custom_call.1} parent=0
    _
  %s4 = ssub.s32 1, %s2
  %s5 = scalar_select 0, %s4, %s2
  $region1: #{tpu_custom_call.1} parent=0
    #allocation2 [shape = 'u8[4096]{0}', space=vmem, size = 0x1000, scoped, tag = 'input window, operand 0, single buffered']
    #allocation3 [shape = 's32[1]{0}', space=sflag, size = 0x4, scoped, tag = 'scoped memory for tpu_custom_call.1']
    #allocation4 [shape = 's32[1]{0}', space=sflag, size = 0x4, scoped, tag = 'scoped memory for tpu_custom_call.1']
    #allocation5 [shape = 'u8[4096]{0}', space=vmem, size = 0x1000, scoped, tag = 'output window, operand 0, single buffered']
    %6 = vsyncpa [#allocation3], 0
    %7 = vsyncpa [#allocation4], 0
    // Predicated region
    $region2: #{tpu_custom_call.1} parent=1 // pred_check
      _
    $region3: #{tpu_custom_call.1} parent=1 // pred_check_branch
      %9 = sbr.rel (0) target = $region5
    $region4: #{tpu_custom_call.1} parent=1 // pred_region
      %s11 = ssub.s32 128, 128
      %12 = vsyncadd [#allocation3], %s11
      %s14 = sshll.u32 [#allocation2], 4
      %s15 = int_to_ptr.vmem [resolvable:$true] %s14
      %17 = dma.hbm_to_vmem [thread:$0]  %s0, 128, %s15, [#allocation3]
    $region5: #{tpu_custom_call.1} parent=1 // pred_fallthru
      _
    // Predicated region
    $region6: #{tpu_custom_call.1} parent=1 // pred_check
      _
    $region7: #{tpu_custom_call.1} parent=1 // pred_check_branch
      %19 = sbr.rel (0) target = $region9
    $region8: #{tpu_custom_call.1} parent=1 // pred_region
      %20 = dma.done [#allocation3], 128
    $region9: #{tpu_custom_call.1} parent=1 // pred_fallthru
      _
    %v21 = vld [vmem:[#allocation2] sm:$0xff]
    %22 = vst [vmem:[#allocation5] sm:$0xff] %v21
    // Predicated region
    $region10: #{tpu_custom_call.1} parent=1 // pred_check
      _
    $region11: #{tpu_custom_call.1} parent=1 // pred_check_branch
      %24 = sbr.rel (0) target = $region13
    $region12: #{tpu_custom_call.1} parent=1 // pred_region
      %s26 = ssub.s32 128, 128
      %27 = vsyncadd [#allocation4], %s26
      %s29 = sshll.u32 [#allocation5], 4
      %s30 = int_to_ptr.vmem [resolvable:$true] %s29
      %32 = dma.vmem_to_hbm [thread:$0]  %s30, 128, %s1, [#allocation4]
    $region13: #{tpu_custom_call.1} parent=1 // pred_fallthru
      _
    // Predicated region
    $region14: #{tpu_custom_call.1} parent=1 // pred_check
      _
    $region15: #{tpu_custom_call.1} parent=1 // pred_check_branch
      %34 = sbr.rel (0) target = $region17
    $region16: #{tpu_custom_call.1} parent=1 // pred_region
      %35 = dma.done [#allocation4], 128
    $region17: #{tpu_custom_call.1} parent=1 // pred_fallthru
      _
    %36 = vsyncpa [#allocation3], 1
    %37 = vsyncpa [#allocation4], 1

</llo_original>
